<compile_context>
chip_gen: v7x
topology: tpu7x:2x2x1
jax: 0.10.0
libtpu: 0.0.40
codegen_flags: <defaults>
</compile_context>

<pallas_src>
import functools

import jax
import jax.numpy as jnp
from jax.experimental import pallas as pl
from jax.experimental.pallas import tpu as pltpu


_LANE = 128     # TPU lane width
_SUBLANE = 8    # TPU sublane count (f32)


def _round_up(x, m):
    return ((x + m - 1) // m) * m


def _pick_tile(b_min, tb_cap):
    """Pick a batch tile (multiple of 8, <= tb_cap) that first minimizes the
    number of grid steps, then the padded-row waste, preferring larger tiles."""
    best_key, best_tb = None, _SUBLANE
    for cand in range(_SUBLANE, tb_cap + 1, _SUBLANE):
        steps = -(-b_min // cand)
        waste = steps * cand - b_min
        key = (steps, waste, -cand)
        if best_key is None or key < best_key:
            best_key, best_tb = key, cand
    return best_tb


def dqn_kernel(x_ref, w1_ref, b1_ref, w2_ref, b2_ref, w3_ref, b3_ref, out_ref,
               *, input_dim):
    # ---- fc1 + ReLU (VPU) ---------------------------------------------------
    # K (=4) is tiny: `input_dim` broadcast-FMAs over the unpadded (tb, K) block.
    # This only ever touches the real feature columns, so no K padding is needed
    # anywhere (HBM, DMA, or VMEM).
    xv = x_ref[...]                       # (TB, K)
    w1 = w1_ref[...]                      # (K, H)
    acc = xv[:, 0:1] * w1[0:1, :]         # (TB, H)
    for k in range(1, input_dim):         # static, fully unrolled
        acc = acc + xv[:, k:k + 1] * w1[k:k + 1, :]
    h1 = jnp.maximum(acc + b1_ref[...], 0.0)

    # ---- fc2 + ReLU (MXU) ---------------------------------------------------
    h2 = jnp.dot(h1, w2_ref[...], preferred_element_type=jnp.float32)
    h2 = jnp.maximum(h2 + b2_ref[...], 0.0)

    # ---- fc3 (MXU; true-width output block -> minimal HBM writeback) --------
    out = jnp.dot(h2, w3_ref[...], preferred_element_type=jnp.float32)
    out_ref[...] = (out + b3_ref[...]).astype(out_ref.dtype)


def dqn_forward(x, params, *, tile_b=2048):
    """Fused 3-layer MLP forward. x: (B, input_dim) float32.

    params: (w1, b1, w2, b2, w3, b3) with weights in (in_features, out_features)
    layout and biases shaped (1, out_features).
    """
    w1, b1, w2, b2, w3, b3 = params
    B, input_dim = x.shape
    hidden = w1.shape[1]
    out_dim = w3.shape[1]

    x = x.astype(jnp.float32)

    # ---- batch tiling (the only padding this kernel ever does) --------------
    b_min = _round_up(B, _SUBLANE)
    tb_cap = min(_round_up(tile_b, _SUBLANE), b_min)     # robust to odd tile_b
    if b_min >= 2 * _SUBLANE:
        # Ensure >=2 grid steps when possible so "parallel" shards across both
        # TensorCores on v7x (harmless on v5e/v6e).
        tb_cap = min(tb_cap, _round_up(-(-b_min // 2), _SUBLANE))
    tb = _pick_tile(b_min, tb_cap)
    b_pad = -(-B // tb) * tb

    if b_pad != B:
        x_in = jnp.zeros((b_pad, input_dim), jnp.float32).at[:B].set(x)
    else:
        x_in = x

    grid = (b_pad // tb,)

    # x / out walk the batch; weights & biases stay VMEM-resident (constant maps).
    batch_spec = lambda shape: pl.BlockSpec(shape, lambda i: (i, 0))
    resident = lambda shape: pl.BlockSpec(shape, lambda i: (0, 0))

    flops = 2 * B * (input_dim * hidden + hidden * hidden + hidden * out_dim)
    bytes_accessed = 4 * (b_pad * input_dim + w1.size + b1.size + w2.size
                          + b2.size + w3.size + b3.size + b_pad * out_dim)

    out = pl.pallas_call(
        functools.partial(dqn_kernel, input_dim=input_dim),
        out_shape=jax.ShapeDtypeStruct((b_pad, out_dim), jnp.float32),
        grid=grid,
        in_specs=[
            batch_spec((tb, input_dim)),
            resident((input_dim, hidden)), resident((1, hidden)),
            resident((hidden, hidden)), resident((1, hidden)),
            resident((hidden, out_dim)), resident((1, out_dim)),
        ],
        out_specs=batch_spec((tb, out_dim)),
        compiler_params=pltpu.CompilerParams(
            dimension_semantics=("parallel",)),
        cost_estimate=pl.CostEstimate(
            flops=flops, transcendentals=0, bytes_accessed=bytes_accessed),
    )(x_in, w1, b1, w2, b2, w3, b3)

    return out[:B] if b_pad != B else out


def init_params(key, input_dim, output_dim, hidden=64):
    """Deterministic init mimicking nn.Linear's U(-1/sqrt(fan_in), 1/sqrt(fan_in))."""
    ks = jax.random.split(key, 6)

    def linear(kw, kb, fan_in, fan_out):
        bound = 1.0 / jnp.sqrt(jnp.float32(fan_in))
        # stored as (in, out) so the kernel does x @ W  (== PyTorch x @ W.T)
        w = jax.random.uniform(kw, (fan_in, fan_out), jnp.float32, -bound, bound)
        b = jax.random.uniform(kb, (1, fan_out), jnp.float32, -bound, bound)
        return w, b

    w1, b1 = linear(ks[0], ks[1], input_dim, hidden)
    w2, b2 = linear(ks[2], ks[3], hidden, hidden)
    w3, b3 = linear(ks[4], ks[5], hidden, output_dim)
    return (w1, b1, w2, b2, w3, b3)


def dqn_reference(x, params):
    """Plain-JAX reference matching PyTorch forward semantics."""
    w1, b1, w2, b2, w3, b3 = params
    h = jnp.maximum(x @ w1 + b1, 0.0)
    h = jnp.maximum(h @ w2 + b2, 0.0)
    return h @ w3 + b3


if __name__ == "__main__":
    key = jax.random.PRNGKey(0)
    k_param, k_x = jax.random.split(key)

    input_dim = 4    # CartPole observation dim
    output_dim = 2   # CartPole action dim
    batch = 8        # small demo batch; kernel tiles up to 2048 rows per grid step

    params = init_params(k_param, input_dim, output_dim)
    x = jax.random.normal(k_x, (batch, input_dim), jnp.float32)

    out = jax.block_until_ready(dqn_forward(x, params))
    ref = dqn_reference(x, params)
    assert out.shape == (batch, output_dim), out.shape
    assert jnp.allclose(out, ref, atol=1e-5, rtol=1e-5), "mismatch vs reference"

    # Ragged batch: exercises batch padding + a multi-step (megacore-shardable) grid.
    x2 = jax.random.normal(jax.random.PRNGKey(1), (10, input_dim), jnp.float32)
    out2 = jax.block_until_ready(dqn_forward(x2, params))
    assert out2.shape == (10, output_dim), out2.shape
    assert jnp.allclose(out2, dqn_reference(x2, params), atol=1e-5, rtol=1e-5), \
        "ragged-batch mismatch vs reference"

    print("KERNEL_OK")
</pallas_src>

<mosaic_0001>
module attributes {stable_mosaic.version = 11 : i64} {
  func.func @dqn_kernel(%arg0: i32, %arg1: memref<8x4xf32, #tpu.memory_space<vmem>>, %arg2: memref<4x64xf32, #tpu.memory_space<vmem>>, %arg3: memref<1x64xf32, #tpu.memory_space<vmem>>, %arg4: memref<64x64xf32, #tpu.memory_space<vmem>>, %arg5: memref<1x64xf32, #tpu.memory_space<vmem>>, %arg6: memref<64x2xf32, #tpu.memory_space<vmem>>, %arg7: memref<1x2xf32, #tpu.memory_space<vmem>>, %arg8: memref<8x2xf32, #tpu.memory_space<vmem>>) attributes {dimension_semantics = [#tpu.dimension_semantics<parallel>], iteration_bounds = array<i64: 1>, scalar_prefetch = 0 : i64, scratch_operands = 0 : i64, tpu.core_type = #tpu.core_type<tc>, window_params = [{transform_indices = @transform_0, window_bounds = array<i64: 8, 4>}, {pipeline_mode = #tpu.pipeline_mode<synchronous>, transform_indices = @transform_1, window_bounds = array<i64: 4, 64>}, {pipeline_mode = #tpu.pipeline_mode<synchronous>, transform_indices = @transform_2, window_bounds = array<i64: 1, 64>}, {pipeline_mode = #tpu.pipeline_mode<synchronous>, transform_indices = @transform_3, window_bounds = array<i64: 64, 64>}, {pipeline_mode = #tpu.pipeline_mode<synchronous>, transform_indices = @transform_4, window_bounds = array<i64: 1, 64>}, {pipeline_mode = #tpu.pipeline_mode<synchronous>, transform_indices = @transform_5, window_bounds = array<i64: 64, 2>}, {pipeline_mode = #tpu.pipeline_mode<synchronous>, transform_indices = @transform_6, window_bounds = array<i64: 1, 2>}, {transform_indices = @transform_7, window_bounds = array<i64: 8, 2>}]} {
    %c0 = arith.constant 0 : index
    %c0_0 = arith.constant 0 : index
    %0 = vector.load %arg1[%c0, %c0_0] : memref<8x4xf32, #tpu.memory_space<vmem>>, vector<8x4xf32>
    %c0_1 = arith.constant 0 : index
    %c0_2 = arith.constant 0 : index
    %1 = vector.load %arg2[%c0_1, %c0_2] : memref<4x64xf32, #tpu.memory_space<vmem>>, vector<4x64xf32>
    %2 = vector.extract_strided_slice %0 {offsets = [0, 0], sizes = [8, 1], strides = [1, 1]} : vector<8x4xf32> to vector<8x1xf32>
    %3 = vector.extract_strided_slice %1 {offsets = [0, 0], sizes = [1, 64], strides = [1, 1]} : vector<4x64xf32> to vector<1x64xf32>
    %4 = vector.broadcast %2 : vector<8x1xf32> to vector<8x64xf32>
    %5 = vector.broadcast %3 : vector<1x64xf32> to vector<8x64xf32>
    %6 = arith.mulf %4, %5 : vector<8x64xf32>
    %7 = vector.extract_strided_slice %0 {offsets = [0, 1], sizes = [8, 1], strides = [1, 1]} : vector<8x4xf32> to vector<8x1xf32>
    %8 = vector.extract_strided_slice %1 {offsets = [1, 0], sizes = [1, 64], strides = [1, 1]} : vector<4x64xf32> to vector<1x64xf32>
    %9 = vector.broadcast %7 : vector<8x1xf32> to vector<8x64xf32>
    %10 = vector.broadcast %8 : vector<1x64xf32> to vector<8x64xf32>
    %11 = arith.mulf %9, %10 : vector<8x64xf32>
    %12 = arith.addf %6, %11 : vector<8x64xf32>
    %13 = vector.extract_strided_slice %0 {offsets = [0, 2], sizes = [8, 1], strides = [1, 1]} : vector<8x4xf32> to vector<8x1xf32>
    %14 = vector.extract_strided_slice %1 {offsets = [2, 0], sizes = [1, 64], strides = [1, 1]} : vector<4x64xf32> to vector<1x64xf32>
    %15 = vector.broadcast %13 : vector<8x1xf32> to vector<8x64xf32>
    %16 = vector.broadcast %14 : vector<1x64xf32> to vector<8x64xf32>
    %17 = arith.mulf %15, %16 : vector<8x64xf32>
    %18 = arith.addf %12, %17 : vector<8x64xf32>
    %19 = vector.extract_strided_slice %0 {offsets = [0, 3], sizes = [8, 1], strides = [1, 1]} : vector<8x4xf32> to vector<8x1xf32>
    %20 = vector.extract_strided_slice %1 {offsets = [3, 0], sizes = [1, 64], strides = [1, 1]} : vector<4x64xf32> to vector<1x64xf32>
    %21 = vector.broadcast %19 : vector<8x1xf32> to vector<8x64xf32>
    %22 = vector.broadcast %20 : vector<1x64xf32> to vector<8x64xf32>
    %23 = arith.mulf %21, %22 : vector<8x64xf32>
    %24 = arith.addf %18, %23 : vector<8x64xf32>
    %c0_3 = arith.constant 0 : index
    %c0_4 = arith.constant 0 : index
    %25 = vector.load %arg3[%c0_3, %c0_4] : memref<1x64xf32, #tpu.memory_space<vmem>>, vector<1x64xf32>
    %26 = vector.broadcast %25 : vector<1x64xf32> to vector<8x64xf32>
    %27 = arith.addf %24, %26 : vector<8x64xf32>
    %cst = arith.constant 0.000000e+00 : f32
    %28 = vector.broadcast %cst : f32 to vector<8x64xf32>
    %29 = arith.maximumf %27, %28 : vector<8x64xf32>
    %c0_5 = arith.constant 0 : index
    %c0_6 = arith.constant 0 : index
    %30 = vector.load %arg4[%c0_5, %c0_6] : memref<64x64xf32, #tpu.memory_space<vmem>>, vector<64x64xf32>
    %cst_7 = arith.constant dense<0.000000e+00> : vector<8x64xf32>
    %31 = tpu.matmul %29, %30, %cst_7 {dimension_numbers = #tpu.dot_dimension_numbers<[1], [0], [0], [1], [0, 0, 1, 1], [], []>} : vector<8x64xf32>, vector<64x64xf32>, vector<8x64xf32> -> vector<8x64xf32>
    %c0_8 = arith.constant 0 : index
    %c0_9 = arith.constant 0 : index
    %32 = vector.load %arg5[%c0_8, %c0_9] : memref<1x64xf32, #tpu.memory_space<vmem>>, vector<1x64xf32>
    %33 = vector.broadcast %32 : vector<1x64xf32> to vector<8x64xf32>
    %34 = arith.addf %31, %33 : vector<8x64xf32>
    %cst_10 = arith.constant 0.000000e+00 : f32
    %35 = vector.broadcast %cst_10 : f32 to vector<8x64xf32>
    %36 = arith.maximumf %34, %35 : vector<8x64xf32>
    %c0_11 = arith.constant 0 : index
    %c0_12 = arith.constant 0 : index
    %37 = vector.load %arg6[%c0_11, %c0_12] : memref<64x2xf32, #tpu.memory_space<vmem>>, vector<64x2xf32>
    %cst_13 = arith.constant dense<0.000000e+00> : vector<8x2xf32>
    %38 = tpu.matmul %36, %37, %cst_13 {dimension_numbers = #tpu.dot_dimension_numbers<[1], [0], [0], [1], [0, 0, 1, 1], [], []>} : vector<8x64xf32>, vector<64x2xf32>, vector<8x2xf32> -> vector<8x2xf32>
    %c0_14 = arith.constant 0 : index
    %c0_15 = arith.constant 0 : index
    %39 = vector.load %arg7[%c0_14, %c0_15] : memref<1x2xf32, #tpu.memory_space<vmem>>, vector<1x2xf32>
    %40 = vector.broadcast %39 : vector<1x2xf32> to vector<8x2xf32>
    %41 = arith.addf %38, %40 : vector<8x2xf32>
    %c0_16 = arith.constant 0 : index
    %c0_17 = arith.constant 0 : index
    %42 = vector.load %arg8[%c0_16, %c0_17] : memref<8x2xf32, #tpu.memory_space<vmem>>, vector<8x2xf32>
    tpu.vector_store %arg8[%c0_16, %c0_17], %41 {strides = array<i32>} : memref<8x2xf32, #tpu.memory_space<vmem>>, vector<8x2xf32>,
    return
  }
  func.func @transform_0(%arg0: i32) -> (i32, i32) {
    %c0_i32 = arith.constant 0 : i32
    %c0_i32_0 = arith.constant 0 : i32
    return %arg0, %c0_i32 : i32, i32
  }
  func.func @transform_1(%arg0: i32) -> (i32, i32) {
    %c0_i32 = arith.constant 0 : i32
    %c0_i32_0 = arith.constant 0 : i32
    %c0_i32_1 = arith.constant 0 : i32
    return %c0_i32, %c0_i32_0 : i32, i32
  }
  func.func @transform_2(%arg0: i32) -> (i32, i32) {
    %c0_i32 = arith.constant 0 : i32
    %c0_i32_0 = arith.constant 0 : i32
    %c0_i32_1 = arith.constant 0 : i32
    return %c0_i32, %c0_i32_0 : i32, i32
  }
  func.func @transform_3(%arg0: i32) -> (i32, i32) {
    %c0_i32 = arith.constant 0 : i32
    %c0_i32_0 = arith.constant 0 : i32
    %c0_i32_1 = arith.constant 0 : i32
    return %c0_i32, %c0_i32_0 : i32, i32
  }
  func.func @transform_4(%arg0: i32) -> (i32, i32) {
    %c0_i32 = arith.constant 0 : i32
    %c0_i32_0 = arith.constant 0 : i32
    %c0_i32_1 = arith.constant 0 : i32
    return %c0_i32, %c0_i32_0 : i32, i32
  }
  func.func @transform_5(%arg0: i32) -> (i32, i32) {
    %c0_i32 = arith.constant 0 : i32
    %c0_i32_0 = arith.constant 0 : i32
    %c0_i32_1 = arith.constant 0 : i32
    return %c0_i32, %c0_i32_0 : i32, i32
  }
  func.func @transform_6(%arg0: i32) -> (i32, i32) {
    %c0_i32 = arith.constant 0 : i32
    %c0_i32_0 = arith.constant 0 : i32
    %c0_i32_1 = arith.constant 0 : i32
    return %c0_i32, %c0_i32_0 : i32, i32
  }
  func.func @transform_7(%arg0: i32) -> (i32, i32) {
    %c0_i32 = arith.constant 0 : i32
    %c0_i32_0 = arith.constant 0 : i32
    return %arg0, %c0_i32 : i32, i32
  }
}

</mosaic_0001>

<llo_original>
// kernel: tpu_custom_call.1
$region0: #{tpu_custom_call.1}
  #allocation0 [shape = 'u32[]', space=smem, size = 0x4, offset = 0x4, fixed_abs, tag = 'smem constant byte address 0x4 - core index']
  #allocation1 [shape = 'u32[144,128]{1,0:T(1,128)}', space=vmem, size = 0x12000, scoped, tag = 'internal scratch']
  %s0 = inlined_call_operand.vmem [shape: f32[8,4], index: 0, kind: input, shape index: {}]
  %s1 = inlined_call_operand.vmem [shape: f32[4,64], index: 1, kind: input, shape index: {}]
  %s2 = inlined_call_operand.vmem [shape: f32[1,64], index: 2, kind: input, shape index: {}]
  %s3 = inlined_call_operand.vmem [shape: f32[64,64], index: 3, kind: input, shape index: {}]
  %s4 = inlined_call_operand.vmem [shape: f32[1,64], index: 4, kind: input, shape index: {}]
  %s5 = inlined_call_operand.vmem [shape: f32[64,2], index: 5, kind: input, shape index: {}]
  %s6 = inlined_call_operand.vmem [shape: f32[1,2], index: 6, kind: input, shape index: {}]
  %s7 = inlined_call_operand.vmem [shape: f32[8,2], index: 7, kind: output, shape index: {}]
  %s8 = sld [smem:[#allocation0]]
  $region38: #{tpu_custom_call.1} parent=0
    _
  %s10 = ssub.s32 1, %s8
  %s11 = scalar_select 0, %s10, %s8
  // Predicated region
  $region2: #{tpu_custom_call.1} parent=0 // pred_check
    _
  $region3: #{tpu_custom_call.1} parent=0 // pred_check_branch
    %13 = sbr.rel (0) target = $region5
  $region4: #{tpu_custom_call.1} parent=0 // pred_region
    _
  $region5: #{tpu_custom_call.1} parent=0 // pred_fallthru
    _
  // Predicated region
  $region6: #{tpu_custom_call.1} parent=0 // pred_check
    _
  $region7: #{tpu_custom_call.1} parent=0 // pred_check_branch
    %15 = sbr.rel (0) target = $region9
  $region8: #{tpu_custom_call.1} parent=0 // pred_region
    _
  $region9: #{tpu_custom_call.1} parent=0 // pred_fallthru
    _
  // Predicated region
  $region10: #{tpu_custom_call.1} parent=0 // pred_check
    _
  $region11: #{tpu_custom_call.1} parent=0 // pred_check_branch
    %17 = sbr.rel (0) target = $region13
  $region12: #{tpu_custom_call.1} parent=0 // pred_region
    _
  $region13: #{tpu_custom_call.1} parent=0 // pred_fallthru
    _
  // Predicated region
  $region14: #{tpu_custom_call.1} parent=0 // pred_check
    _
  $region15: #{tpu_custom_call.1} parent=0 // pred_check_branch
    %19 = sbr.rel (0) target = $region17
  $region16: #{tpu_custom_call.1} parent=0 // pred_region
    _
  $region17: #{tpu_custom_call.1} parent=0 // pred_fallthru
    _
  // Predicated region
  $region18: #{tpu_custom_call.1} parent=0 // pred_check
    _
  $region19: #{tpu_custom_call.1} parent=0 // pred_check_branch
    %21 = sbr.rel (0) target = $region21
  $region20: #{tpu_custom_call.1} parent=0 // pred_region
    _
  $region21: #{tpu_custom_call.1} parent=0 // pred_fallthru
    _
  // Predicated region
  $region22: #{tpu_custom_call.1} parent=0 // pred_check
    _
  $region23: #{tpu_custom_call.1} parent=0 // pred_check_branch
    %23 = sbr.rel (0) target = $region25
  $region24: #{tpu_custom_call.1} parent=0 // pred_region
    _
  $region25: #{tpu_custom_call.1} parent=0 // pred_fallthru
    _
  // Predicated region
  $region26: #{tpu_custom_call.1} parent=0 // pred_check
    _
  $region27: #{tpu_custom_call.1} parent=0 // pred_check_branch
    %25 = sbr.rel (0) target = $region29
  $region28: #{tpu_custom_call.1} parent=0 // pred_region
    _
  $region29: #{tpu_custom_call.1} parent=0 // pred_fallthru
    _
  %v26 = vld [vmem:[%s0] sm:$0xff]
  %v27 = vld [vmem:[%s1] sm:$0xf]
  %29 = vset.pattern.permute.xlu0 0
  %30 = vperm.xlu0 %29, %v26
  %v31 = vpop.permute.xlu0 %30
  %v33 = vlaneseq
  %v34 = vshrl.u32 %v33, 7
  %v35 = vsub.s32 0, %v34
  %v36 = vrot.slane %v27, %v35
  %v37 = vmul.f32 %v31, %v36
  %38 = vset.pattern.permute.xlu0 1
  %39 = vperm.xlu0 %38, %v26
  %v40 = vpop.permute.xlu0 %39
  %v42 = vlaneseq
  %v43 = vshrl.u32 %v42, 7
  %v44 = vsub.s32 1, %v43
  %v45 = vrot.slane %v27, %v44
  %v46 = vmul.f32 %v40, %v45
  %v47 = vadd.f32 %v37, %v46
  %48 = vset.pattern.permute.xlu0 2
  %49 = vperm.xlu0 %48, %v26
  %v50 = vpop.permute.xlu0 %49
  %v52 = vlaneseq
  %v53 = vshrl.u32 %v52, 7
  %v54 = vsub.s32 2, %v53
  %v55 = vrot.slane %v27, %v54
  %v56 = vmul.f32 %v50, %v55
  %v57 = vadd.f32 %v47, %v56
  %58 = vset.pattern.permute.xlu0 3
  %59 = vperm.xlu0 %58, %v26
  %v60 = vpop.permute.xlu0 %59
  %v62 = vlaneseq
  %v63 = vshrl.u32 %v62, 7
  %v64 = vsub.s32 3, %v63
  %v65 = vrot.slane %v27, %v64
  %v66 = vmul.f32 %v60, %v65
  %v67 = vadd.f32 %v57, %v66
  %v68 = vld [vmem:[%s2] sm:$0x1]
  %v70 = vlaneseq
  %v71 = vshrl.u32 %v70, 7
  %v72 = vsub.s32 0, %v71
  %v73 = vrot.slane %v68, %v72
  %v75 = vadd.f32 %v67, %v73
  %v76 = vmax.f32 %v75, 0.0
  %v77 = vld [vmem:[%s3] sm:$0xff]
  %v78 = vld [vmem:[%s3 + $0x8] sm:$0xff]
  %v79 = vld [vmem:[%s3 + $0x10] sm:$0xff]
  %v80 = vld [vmem:[%s3 + $0x18] sm:$0xff]
  %v81 = vld [vmem:[%s3 + $0x20] sm:$0xff]
  %v82 = vld [vmem:[%s3 + $0x28] sm:$0xff]
  %v83 = vld [vmem:[%s3 + $0x30] sm:$0xff]
  %v84 = vld [vmem:[%s3 + $0x38] sm:$0xff]
  %v85 = vld [vmem:[%s4] sm:$0x1]
  %v87 = vlaneseq
  %v88 = vshrl.u32 %v87, 7
  %v89 = vsub.s32 0, %v88
  %v90 = vrot.slane %v85, %v89
  %vm92 = vcmask 523264
  %v94 = vsel %vm92, %v76, 0
  %96 = vmatprep.subr.mxu0 0.0
  %97 = vmatpush1.msra.mxu0 %v77
  %98 = vmatprep.subr.mxu0 0.0
  %99 = vmatpush1.msra.mxu0 %v78
  %100 = vmatprep.subr.mxu0 0.0
  %101 = vmatpush1.msra.mxu0 %v79
  %102 = vmatprep.subr.mxu0 0.0
  %103 = vmatpush1.msra.mxu0 %v80
  %104 = vmatprep.subr.mxu0 0.0
  %105 = vmatpush1.msra.mxu0 %v81
  %106 = vmatprep.subr.mxu0 0.0
  %107 = vmatpush1.msra.mxu0 %v82
  %108 = vmatprep.subr.mxu0 0.0
  %109 = vmatpush1.msra.mxu0 %v83
  %110 = vmatprep.subr.mxu0 0.0
  %111 = vmatpush1.msra.mxu0 %v84
  %112 = vmatprep.subr.mxu0 0.0
  %113 = vmatpush1.msra.mxu0 0.0
  %114 = vmatprep.subr.mxu0 0.0
  %115 = vmatpush1.msra.mxu0 0.0
  %116 = vmatprep.subr.mxu0 0.0
  %117 = vmatpush1.msra.mxu0 0.0
  %118 = vmatprep.subr.mxu0 0.0
  %119 = vmatpush1.msra.mxu0 0.0
  %120 = vmatprep.subr.mxu0 0.0
  %121 = vmatpush1.msra.mxu0 0.0
  %122 = vmatprep.subr.mxu0 0.0
  %123 = vmatpush1.msra.mxu0 0.0
  %124 = vmatprep.subr.mxu0 0.0
  %125 = vmatpush1.msra.mxu0 0.0
  %126 = vmatprep.subr.mxu0 0.0
  %127 = vmatpush1.msra.mxu0 0.0
  %128 = vmatprep.subr.mxu0 0.0
  %129 = vmatpush1.msra.mxu0 0.0
  %130 = vmatprep.subr.mxu0 0.0
  %131 = vmatpush1.msra.mxu0 0.0
  %132 = vmatprep.subr.mxu0 0.0
  %133 = vmatpush1.msra.mxu0 0.0
  %134 = vmatprep.subr.mxu0 0.0
  %135 = vmatpush1.msra.mxu0 0.0
  %136 = vmatprep.subr.mxu0 0.0
  %137 = vmatpush1.msra.mxu0 0.0
  %138 = vmatprep.subr.mxu0 0.0
  %139 = vmatpush1.msra.mxu0 0.0
  %140 = vmatprep.subr.mxu0 0.0
  %141 = vmatpush1.msra.mxu0 0.0
  %142 = vmatprep.subr.mxu0 0.0
  %143 = vmatpush1.msra.mxu0 0.0
  %144 = vmatprep.subr.mxu0 0.0
  %145 = vmatpush1.msra.mxu0 0.0
  %146 = vmatprep.subr.mxu0 0.0
  %147 = vmatpush1.msra.mxu0 0.0
  %148 = vmatprep.subr.mxu0 0.0
  %149 = vmatpush1.msra.mxu0 0.0
  %150 = vmatprep.subr.mxu0 0.0
  %151 = vmatpush1.msra.mxu0 0.0
  %152 = vmatprep.subr.mxu0 0.0
  %153 = vmatpush1.msra.mxu0 0.0
  %154 = vmatprep.subr.mxu0 0.0
  %155 = vmatpush1.msra.mxu0 0.0
  %156 = vmatprep.subr.mxu0 0.0
  %157 = vmatpush1.msra.mxu0 0.0
  %158 = vmatprep.subr.mxu0 0.0
  %159 = vmatpush1.msra.mxu0 0.0
  %160 = vmatprep.mubr.f32.mxu0 0.0
  %161 = vmatmul.mubr.f32.gmra.mrb[0].mxu0 %v94
  %v162 = vpop.f32.mrb[0].mxu0
  %v163 = vadd.f32 %v90, %v162
  %v164 = vpop.f32.mrb[0].mxu0
  %165 = vdwg.mxu0
  %v166 = vmax.f32 %v163, 0.0
  %v167 = vld [vmem:[%s5] sm:$0xff]
  %v168 = vld [vmem:[%s5 + $0x8] sm:$0xff]
  %v169 = vld [vmem:[%s5 + $0x10] sm:$0xff]
  %v170 = vld [vmem:[%s5 + $0x18] sm:$0xff]
  %v171 = vld [vmem:[%s5 + $0x20] sm:$0xff]
  %v172 = vld [vmem:[%s5 + $0x28] sm:$0xff]
  %v173 = vld [vmem:[%s5 + $0x30] sm:$0xff]
  %v174 = vld [vmem:[%s5 + $0x38] sm:$0xff]
  %v175 = vld [vmem:[%s6] sm:$0x1]
  %v177 = vlaneseq
  %v178 = vshrl.u32 %v177, 7
  %v179 = vsub.s32 0, %v178
  %v180 = vrot.slane %v175, %v179
  %v183 = vsel %vm92, %v166, 0
  %185 = vmatprep.subr.mxu0 0.0
  %186 = vmatpush1.msra.mxu0 %v167
  %187 = vmatprep.subr.mxu0 0.0
  %188 = vmatpush1.msra.mxu0 %v168
  %189 = vmatprep.subr.mxu0 0.0
  %190 = vmatpush1.msra.mxu0 %v169
  %191 = vmatprep.subr.mxu0 0.0
  %192 = vmatpush1.msra.mxu0 %v170
  %193 = vmatprep.subr.mxu0 0.0
  %194 = vmatpush1.msra.mxu0 %v171
  %195 = vmatprep.subr.mxu0 0.0
  %196 = vmatpush1.msra.mxu0 %v172
  %197 = vmatprep.subr.mxu0 0.0
  %198 = vmatpush1.msra.mxu0 %v173
  %199 = vmatprep.subr.mxu0 0.0
  %200 = vmatpush1.msra.mxu0 %v174
  %201 = vmatprep.subr.mxu0 0.0
  %202 = vmatpush1.msra.mxu0 0.0
  %203 = vmatprep.subr.mxu0 0.0
  %204 = vmatpush1.msra.mxu0 0.0
  %205 = vmatprep.subr.mxu0 0.0
  %206 = vmatpush1.msra.mxu0 0.0
  %207 = vmatprep.subr.mxu0 0.0
  %208 = vmatpush1.msra.mxu0 0.0
  %209 = vmatprep.subr.mxu0 0.0
  %210 = vmatpush1.msra.mxu0 0.0
  %211 = vmatprep.subr.mxu0 0.0
  %212 = vmatpush1.msra.mxu0 0.0
  %213 = vmatprep.subr.mxu0 0.0
  %214 = vmatpush1.msra.mxu0 0.0
  %215 = vmatprep.subr.mxu0 0.0
  %216 = vmatpush1.msra.mxu0 0.0
  %217 = vmatprep.subr.mxu0 0.0
  %218 = vmatpush1.msra.mxu0 0.0
  %219 = vmatprep.subr.mxu0 0.0
  %220 = vmatpush1.msra.mxu0 0.0
  %221 = vmatprep.subr.mxu0 0.0
  %222 = vmatpush1.msra.mxu0 0.0
  %223 = vmatprep.subr.mxu0 0.0
  %224 = vmatpush1.msra.mxu0 0.0
  %225 = vmatprep.subr.mxu0 0.0
  %226 = vmatpush1.msra.mxu0 0.0
  %227 = vmatprep.subr.mxu0 0.0
  %228 = vmatpush1.msra.mxu0 0.0
  %229 = vmatprep.subr.mxu0 0.0
  %230 = vmatpush1.msra.mxu0 0.0
  %231 = vmatprep.subr.mxu0 0.0
  %232 = vmatpush1.msra.mxu0 0.0
  %233 = vmatprep.subr.mxu0 0.0
  %234 = vmatpush1.msra.mxu0 0.0
  %235 = vmatprep.subr.mxu0 0.0
  %236 = vmatpush1.msra.mxu0 0.0
  %237 = vmatprep.subr.mxu0 0.0
  %238 = vmatpush1.msra.mxu0 0.0
  %239 = vmatprep.subr.mxu0 0.0
  %240 = vmatpush1.msra.mxu0 0.0
  %241 = vmatprep.subr.mxu0 0.0
  %242 = vmatpush1.msra.mxu0 0.0
  %243 = vmatprep.subr.mxu0 0.0
  %244 = vmatpush1.msra.mxu0 0.0
  %245 = vmatprep.subr.mxu0 0.0
  %246 = vmatpush1.msra.mxu0 0.0
  %247 = vmatprep.subr.mxu0 0.0
  %248 = vmatpush1.msra.mxu0 0.0
  %249 = vmatprep.mubr.f32.mxu0 0.0
  %250 = vmatmul.mubr.f32.gmra.mrb[0].mxu0 %v183
  %v251 = vpop.f32.mrb[0].mxu0
  %v252 = vadd.f32 %v180, %v251
  %v253 = vpop.f32.mrb[0].mxu0
  %254 = vdwg.mxu0
  %vm255 = vcmask 15360
  %256 = vst.msk [vmem:[%s7] sm:$0xff] %vm255, %v252
  // Predicated region
  $region30: #{tpu_custom_call.1} parent=0 // pred_check
    _
  $region31: #{tpu_custom_call.1} parent=0 // pred_check_branch
    %258 = sbr.rel (0) target = $region33
  $region32: #{tpu_custom_call.1} parent=0 // pred_region
    _
  $region33: #{tpu_custom_call.1} parent=0 // pred_fallthru
    _
  // Predicated region
  $region34: #{tpu_custom_call.1} parent=0 // pred_check
    _
  $region35: #{tpu_custom_call.1} parent=0 // pred_check_branch
    %260 = sbr.rel (0) target = $region37
  $region36: #{tpu_custom_call.1} parent=0 // pred_region
    _
  $region37: #{tpu_custom_call.1} parent=0 // pred_fallthru
    _

</llo_original>
